<compile_context>
chip_gen: v5e
topology: v5e:2x2
jax: 0.10.0
libtpu: 0.0.40
codegen_flags: <defaults>
</compile_context>

<pallas_src>
import functools

import jax
import jax.numpy as jnp
from jax.experimental import pallas as pl
from jax.experimental.pallas import tpu as pltpu


def _make_dense_kernel(x_ref, w_ref, b_ref, out_ref, buf_ref, *,
                       H, W, C_in, C_out, K, pad, base):
    # x_ref:   (1, C_in, H*W)                   one batch element, NC(HW)
    # w_ref:   (K*K, C_out, C_in)               per-tap weight slabs, t = ky*K+kx
    # b_ref:   (C_out, 1)                       bias (f32)
    # out_ref: (1, C_in + C_out, H*W)           concat([x, relu(conv)], channel)
    # buf_ref: (C_in, base + H*W + pad*W + pad) zero-haloed flat input scratch
    HW = H * W
    halo_r = pad * W + pad

    # Pass-through channels straight from the input ref (no cast round-trip).
    out_ref[0, :C_in, :] = x_ref[0]

    # Zero only the halo regions; the interior is fully overwritten below.
    buf_ref[:, :base] = jnp.zeros((C_in, base), buf_ref.dtype)
    buf_ref[:, base + HW:] = jnp.zeros((C_in, halo_r), buf_ref.dtype)

    # Lane-aligned copy-in (base is a multiple of 128).
    buf_ref[:, base:base + HW] = x_ref[0]

    # Hoisted column masks.  With the zero halo, the only real pixels that can
    # leak into a tap are exactly the ones the dx = +/-1 column masks zero out
    # (row over/underflow already reads halo zeros), so no row mask is needed
    # and dx == 0 taps need no mask at all.
    col = jax.lax.broadcasted_iota(jnp.int32, (C_in, HW), 1) % W
    mask_l = col >= 1          # valid lanes for dx == -1 taps
    mask_r = col <= W - 2      # valid lanes for dx == +1 taps

    # Accumulate per-tap MXU matmuls (no materialised im2col).
    conv = None
    for ky in range(K):
        for kx in range(K):
            dy, dx = ky - pad, kx - pad
            s = dy * W + dx                                      # flat shift
            shifted = buf_ref[:, base + s:base + s + HW]         # (C_in, HW)
            if dx < 0:
                shifted = jnp.where(mask_l, shifted, 0.0)
            elif dx > 0:
                shifted = jnp.where(mask_r, shifted, 0.0)
            t = ky * K + kx
            partial = jnp.dot(w_ref[t], shifted,
                              preferred_element_type=jnp.float32)  # (C_out, HW)
            conv = partial if conv is None else conv + partial

    conv = jnp.maximum(conv + b_ref[...], 0.0)
    out_ref[0, C_in:, :] = conv.astype(out_ref.dtype)


def make_dense_forward(x_nchw, weight, bias, kernel_size=3):
    """x_nchw: (N, C_in, H, W); weight: (C_out, C_in, K, K) OIHW; bias: (C_out,)."""
    N, C_in, H, W = x_nchw.shape
    C_out = weight.shape[0]
    K = kernel_size
    # nn.Conv2d(..., padding=1) + torch.cat over channels is only spatially
    # consistent for kernel_size == 3 (the PyTorch module would fail otherwise).
    assert K == 3, "make_dense with padding=1 requires kernel_size == 3"
    pad = 1
    HW = H * W
    C_tot = C_in + C_out
    halo = pad * W + pad
    base = (halo + 127) // 128 * 128            # left halo rounded to 128 lanes

    # Only free (contiguous) reshapes + a tiny weight rearrangement host-side.
    x_flat = x_nchw.reshape(N, C_in, HW)
    # (O, I, ky, kx) -> (ky, kx, O, I) -> (K*K, O, I): one weight slab per tap.
    w_taps = jnp.transpose(weight, (2, 3, 0, 1)).reshape(K * K, C_out, C_in)
    b2 = bias.reshape(C_out, 1).astype(jnp.float32)

    kernel = functools.partial(_make_dense_kernel, H=H, W=W, C_in=C_in,
                               C_out=C_out, K=K, pad=pad, base=base)

    out_flat = pl.pallas_call(
        kernel,
        out_shape=jax.ShapeDtypeStruct((N, C_tot, HW), x_nchw.dtype),
        grid_spec=pltpu.PrefetchScalarGridSpec(
            num_scalar_prefetch=0,
            grid=(N,),
            in_specs=[
                pl.BlockSpec((1, C_in, HW), lambda n: (n, 0, 0)),
                pl.BlockSpec((K * K, C_out, C_in), lambda n: (0, 0, 0)),
                pl.BlockSpec((C_out, 1), lambda n: (0, 0)),
            ],
            out_specs=pl.BlockSpec((1, C_tot, HW), lambda n: (n, 0, 0)),
            scratch_shapes=[
                pltpu.VMEM((C_in, base + HW + halo), x_nchw.dtype),  # haloed input
            ],
        ),
        compiler_params=pltpu.CompilerParams(
            dimension_semantics=("parallel",),
            # Above the 16/32 MiB scoped defaults (v5e/v6e) so whole-image
            # blocks at larger shapes are not artificially clamped; still
            # within v7x's 64 MiB physical VMEM.
            vmem_limit_bytes=64 * 1024 * 1024),
    )(x_flat, w_taps, b2)

    # TODO(synk): for large H*W / channel counts add an H-tile 'parallel' grid
    # axis (1-row halo) to bound per-step VMEM on v7x and feed both TensorCores
    # at N=1, and batch several N / H tiles into the matmul RHS to lift MXU
    # occupancy (C_out = growthRate is far below the MXU row count).
    return out_flat.reshape(N, C_tot, H, W)


if __name__ == "__main__":
    # Small deterministic example: nChannels=4, growthRate=8, kernel_size=3
    N, C_in, H, W = 2, 4, 16, 16
    growth = 8
    K = 3

    key = jax.random.PRNGKey(0)
    kx, kw, kb = jax.random.split(key, 3)
    x = jax.random.normal(kx, (N, C_in, H, W), dtype=jnp.float32)
    weight = jax.random.normal(kw, (growth, C_in, K, K), dtype=jnp.float32) * 0.1
    bias = jax.random.normal(kb, (growth,), dtype=jnp.float32) * 0.1

    out = make_dense_forward(x, weight, bias, kernel_size=K)
    out = jax.block_until_ready(out)

    # Reference: plain-JAX conv (same semantics as torch F.conv2d + relu + cat)
    ref_conv = jax.lax.conv_general_dilated(
        x, weight, window_strides=(1, 1), padding=((1, 1), (1, 1)),
        dimension_numbers=("NCHW", "OIHW", "NCHW"))
    ref = jnp.concatenate(
        [x, jnp.maximum(ref_conv + bias[None, :, None, None], 0.0)], axis=1)
    assert out.shape == (N, C_in + growth, H, W)
    assert jnp.allclose(out, ref, atol=1e-3, rtol=1e-3), "mismatch vs reference"

    print("KERNEL_OK")
</pallas_src>

<mosaic_0001>
module attributes {stable_mosaic.version = 11 : i64} {
  func.func @_make_dense_kernel(%arg0: i32, %arg1: memref<1x4x256xf32, #tpu.memory_space<vmem>>, %arg2: memref<9x8x4xf32, #tpu.memory_space<vmem>>, %arg3: memref<8x1xf32, #tpu.memory_space<vmem>>, %arg4: memref<1x12x256xf32, #tpu.memory_space<vmem>>, %arg5: memref<4x401xf32, #tpu.memory_space<vmem>>) attributes {dimension_semantics = [#tpu.dimension_semantics<parallel>], iteration_bounds = array<i64: 2>, scalar_prefetch = 0 : i64, scratch_operands = 1 : i64, tpu.core_type = #tpu.core_type<tc>, window_params = [{transform_indices = @transform_0, window_bounds = array<i64: 1, 4, 256>}, {pipeline_mode = #tpu.pipeline_mode<synchronous>, transform_indices = @transform_1, window_bounds = array<i64: 9, 8, 4>}, {pipeline_mode = #tpu.pipeline_mode<synchronous>, transform_indices = @transform_2, window_bounds = array<i64: 8, 1>}, {transform_indices = @transform_3, window_bounds = array<i64: 1, 12, 256>}]} {
    %c0 = arith.constant 0 : index
    %c0_0 = arith.constant 0 : index
    %c0_1 = arith.constant 0 : index
    %0 = vector.load %arg1[%c0, %c0_0, %c0_1] : memref<1x4x256xf32, #tpu.memory_space<vmem>>, vector<1x4x256xf32>
    %1 = vector.shape_cast %0 : vector<1x4x256xf32> to vector<4x256xf32>
    %c0_2 = arith.constant 0 : index
    %c0_3 = arith.constant 0 : index
    %c0_4 = arith.constant 0 : index
    %2 = vector.load %arg4[%c0_2, %c0_3, %c0_4] : memref<1x12x256xf32, #tpu.memory_space<vmem>>, vector<1x4x256xf32>
    %3 = vector.shape_cast %2 : vector<1x4x256xf32> to vector<4x256xf32>
    %4 = vector.shape_cast %1 : vector<4x256xf32> to vector<1x4x256xf32>
    tpu.vector_store %arg4[%c0_2, %c0_3, %c0_4], %4 {strides = array<i32>} : memref<1x12x256xf32, #tpu.memory_space<vmem>>, vector<1x4x256xf32>,
    %cst = arith.constant 0.000000e+00 : f32
    %5 = vector.broadcast %cst : f32 to vector<4x128xf32>
    %c0_5 = arith.constant 0 : index
    %c0_6 = arith.constant 0 : index
    %6 = vector.load %arg5[%c0_5, %c0_6] : memref<4x401xf32, #tpu.memory_space<vmem>>, vector<4x128xf32>
    tpu.vector_store %arg5[%c0_5, %c0_6], %5 {strides = array<i32>} : memref<4x401xf32, #tpu.memory_space<vmem>>, vector<4x128xf32>,
    %cst_7 = arith.constant 0.000000e+00 : f32
    %7 = vector.broadcast %cst_7 : f32 to vector<4x17xf32>
    %c0_8 = arith.constant 0 : index
    %c384 = arith.constant 384 : index
    %8 = vector.load %arg5[%c0_8, %c384] : memref<4x401xf32, #tpu.memory_space<vmem>>, vector<4x17xf32>
    tpu.vector_store %arg5[%c0_8, %c384], %7 {strides = array<i32>} : memref<4x401xf32, #tpu.memory_space<vmem>>, vector<4x17xf32>,
    %c0_9 = arith.constant 0 : index
    %c0_10 = arith.constant 0 : index
    %c0_11 = arith.constant 0 : index
    %9 = vector.load %arg1[%c0_9, %c0_10, %c0_11] : memref<1x4x256xf32, #tpu.memory_space<vmem>>, vector<1x4x256xf32>
    %10 = vector.shape_cast %9 : vector<1x4x256xf32> to vector<4x256xf32>
    %c0_12 = arith.constant 0 : index
    %c128 = arith.constant 128 : index
    %11 = vector.load %arg5[%c0_12, %c128] : memref<4x401xf32, #tpu.memory_space<vmem>>, vector<4x256xf32>
    tpu.vector_store %arg5[%c0_12, %c128], %10 {strides = array<i32>} : memref<4x401xf32, #tpu.memory_space<vmem>>, vector<4x256xf32>,
    %12 = tpu.iota {dimensions = array<i32: 1>} : vector<4x256xi32>
    %c16_i32 = arith.constant 16 : i32
    %c0_i32 = arith.constant 0 : i32
    %13 = arith.cmpi eq, %c16_i32, %c0_i32 : i32
    %c1_i32 = arith.constant 1 : i32
    %14 = arith.select %13, %c1_i32, %c16_i32 : i32
    %15 = vector.broadcast %14 : i32 to vector<4x256xi32>
    %16 = arith.remsi %12, %15 : vector<4x256xi32>
    %c0_i32_13 = arith.constant 0 : i32
    %17 = vector.broadcast %c0_i32_13 : i32 to vector<4x256xi32>
    %18 = arith.cmpi ne, %16, %17 : vector<4x256xi32>
    %c0_i32_14 = arith.constant 0 : i32
    %19 = vector.broadcast %c0_i32_14 : i32 to vector<4x256xi32>
    %20 = arith.cmpi slt, %16, %19 : vector<4x256xi32>
    %c0_i32_15 = arith.constant 0 : i32
    %21 = arith.cmpi slt, %14, %c0_i32_15 : i32
    %22 = vector.broadcast %21 : i1 to vector<4x256xi1>
    %23 = vector.broadcast %22 : vector<4x256xi1> to vector<4x256xi1>
    %24 = arith.xori %20, %23 : vector<4x256xi1>
    %25 = arith.andi %24, %18 : vector<4x256xi1>
    %26 = vector.broadcast %14 : i32 to vector<4x256xi32>
    %27 = arith.addi %16, %26 : vector<4x256xi32>
    %28 = arith.select %25, %27, %16 : vector<4x256xi1>, vector<4x256xi32>
    %c1_i32_16 = arith.constant 1 : i32
    %29 = vector.broadcast %c1_i32_16 : i32 to vector<4x256xi32>
    %30 = arith.cmpi sge, %28, %29 : vector<4x256xi32>
    %c14_i32 = arith.constant 14 : i32
    %31 = vector.broadcast %c14_i32 : i32 to vector<4x256xi32>
    %32 = arith.cmpi sle, %28, %31 : vector<4x256xi32>
    %c0_17 = arith.constant 0 : index
    %c111 = arith.constant 111 : index
    %33 = vector.load %arg5[%c0_17, %c111] : memref<4x401xf32, #tpu.memory_space<vmem>>, vector<4x256xf32>
    %cst_18 = arith.constant 0.000000e+00 : f32
    %34 = vector.broadcast %cst_18 : f32 to vector<4x256xf32>
    %35 = arith.select %30, %33, %34 : vector<4x256xi1>, vector<4x256xf32>
    %c0_19 = arith.constant 0 : index
    %c0_20 = arith.constant 0 : index
    %c0_21 = arith.constant 0 : index
    %36 = vector.load %arg2[%c0_19, %c0_20, %c0_21] : memref<9x8x4xf32, #tpu.memory_space<vmem>>, vector<1x8x4xf32>
    %37 = vector.shape_cast %36 : vector<1x8x4xf32> to vector<8x4xf32>
    %cst_22 = arith.constant dense<0.000000e+00> : vector<8x256xf32>
    %38 = tpu.matmul %37, %35, %cst_22 {dimension_numbers = #tpu.dot_dimension_numbers<[1], [0], [0], [1], [0, 0, 1, 1], [], []>} : vector<8x4xf32>, vector<4x256xf32>, vector<8x256xf32> -> vector<8x256xf32>
    %c0_23 = arith.constant 0 : index
    %c112 = arith.constant 112 : index
    %39 = vector.load %arg5[%c0_23, %c112] : memref<4x401xf32, #tpu.memory_space<vmem>>, vector<4x256xf32>
    %c1 = arith.constant 1 : index
    %c0_24 = arith.constant 0 : index
    %c0_25 = arith.constant 0 : index
    %40 = vector.load %arg2[%c1, %c0_24, %c0_25] : memref<9x8x4xf32, #tpu.memory_space<vmem>>, vector<1x8x4xf32>
    %41 = vector.shape_cast %40 : vector<1x8x4xf32> to vector<8x4xf32>
    %cst_26 = arith.constant dense<0.000000e+00> : vector<8x256xf32>
    %42 = tpu.matmul %41, %39, %cst_26 {dimension_numbers = #tpu.dot_dimension_numbers<[1], [0], [0], [1], [0, 0, 1, 1], [], []>} : vector<8x4xf32>, vector<4x256xf32>, vector<8x256xf32> -> vector<8x256xf32>
    %43 = arith.addf %38, %42 : vector<8x256xf32>
    %c0_27 = arith.constant 0 : index
    %c113 = arith.constant 113 : index
    %44 = vector.load %arg5[%c0_27, %c113] : memref<4x401xf32, #tpu.memory_space<vmem>>, vector<4x256xf32>
    %cst_28 = arith.constant 0.000000e+00 : f32
    %45 = vector.broadcast %cst_28 : f32 to vector<4x256xf32>
    %46 = arith.select %32, %44, %45 : vector<4x256xi1>, vector<4x256xf32>
    %c2 = arith.constant 2 : index
    %c0_29 = arith.constant 0 : index
    %c0_30 = arith.constant 0 : index
    %47 = vector.load %arg2[%c2, %c0_29, %c0_30] : memref<9x8x4xf32, #tpu.memory_space<vmem>>, vector<1x8x4xf32>
    %48 = vector.shape_cast %47 : vector<1x8x4xf32> to vector<8x4xf32>
    %cst_31 = arith.constant dense<0.000000e+00> : vector<8x256xf32>
    %49 = tpu.matmul %48, %46, %cst_31 {dimension_numbers = #tpu.dot_dimension_numbers<[1], [0], [0], [1], [0, 0, 1, 1], [], []>} : vector<8x4xf32>, vector<4x256xf32>, vector<8x256xf32> -> vector<8x256xf32>
    %50 = arith.addf %43, %49 : vector<8x256xf32>
    %c0_32 = arith.constant 0 : index
    %c127 = arith.constant 127 : index
    %51 = vector.load %arg5[%c0_32, %c127] : memref<4x401xf32, #tpu.memory_space<vmem>>, vector<4x256xf32>
    %cst_33 = arith.constant 0.000000e+00 : f32
    %52 = vector.broadcast %cst_33 : f32 to vector<4x256xf32>
    %53 = arith.select %30, %51, %52 : vector<4x256xi1>, vector<4x256xf32>
    %c3 = arith.constant 3 : index
    %c0_34 = arith.constant 0 : index
    %c0_35 = arith.constant 0 : index
    %54 = vector.load %arg2[%c3, %c0_34, %c0_35] : memref<9x8x4xf32, #tpu.memory_space<vmem>>, vector<1x8x4xf32>
    %55 = vector.shape_cast %54 : vector<1x8x4xf32> to vector<8x4xf32>
    %cst_36 = arith.constant dense<0.000000e+00> : vector<8x256xf32>
    %56 = tpu.matmul %55, %53, %cst_36 {dimension_numbers = #tpu.dot_dimension_numbers<[1], [0], [0], [1], [0, 0, 1, 1], [], []>} : vector<8x4xf32>, vector<4x256xf32>, vector<8x256xf32> -> vector<8x256xf32>
    %57 = arith.addf %50, %56 : vector<8x256xf32>
    %c0_37 = arith.constant 0 : index
    %c128_38 = arith.constant 128 : index
    %58 = vector.load %arg5[%c0_37, %c128_38] : memref<4x401xf32, #tpu.memory_space<vmem>>, vector<4x256xf32>
    %c4 = arith.constant 4 : index
    %c0_39 = arith.constant 0 : index
    %c0_40 = arith.constant 0 : index
    %59 = vector.load %arg2[%c4, %c0_39, %c0_40] : memref<9x8x4xf32, #tpu.memory_space<vmem>>, vector<1x8x4xf32>
    %60 = vector.shape_cast %59 : vector<1x8x4xf32> to vector<8x4xf32>
    %cst_41 = arith.constant dense<0.000000e+00> : vector<8x256xf32>
    %61 = tpu.matmul %60, %58, %cst_41 {dimension_numbers = #tpu.dot_dimension_numbers<[1], [0], [0], [1], [0, 0, 1, 1], [], []>} : vector<8x4xf32>, vector<4x256xf32>, vector<8x256xf32> -> vector<8x256xf32>
    %62 = arith.addf %57, %61 : vector<8x256xf32>
    %c0_42 = arith.constant 0 : index
    %c129 = arith.constant 129 : index
    %63 = vector.load %arg5[%c0_42, %c129] : memref<4x401xf32, #tpu.memory_space<vmem>>, vector<4x256xf32>
    %cst_43 = arith.constant 0.000000e+00 : f32
    %64 = vector.broadcast %cst_43 : f32 to vector<4x256xf32>
    %65 = arith.select %32, %63, %64 : vector<4x256xi1>, vector<4x256xf32>
    %c5 = arith.constant 5 : index
    %c0_44 = arith.constant 0 : index
    %c0_45 = arith.constant 0 : index
    %66 = vector.load %arg2[%c5, %c0_44, %c0_45] : memref<9x8x4xf32, #tpu.memory_space<vmem>>, vector<1x8x4xf32>
    %67 = vector.shape_cast %66 : vector<1x8x4xf32> to vector<8x4xf32>
    %cst_46 = arith.constant dense<0.000000e+00> : vector<8x256xf32>
    %68 = tpu.matmul %67, %65, %cst_46 {dimension_numbers = #tpu.dot_dimension_numbers<[1], [0], [0], [1], [0, 0, 1, 1], [], []>} : vector<8x4xf32>, vector<4x256xf32>, vector<8x256xf32> -> vector<8x256xf32>
    %69 = arith.addf %62, %68 : vector<8x256xf32>
    %c0_47 = arith.constant 0 : index
    %c143 = arith.constant 143 : index
    %70 = vector.load %arg5[%c0_47, %c143] : memref<4x401xf32, #tpu.memory_space<vmem>>, vector<4x256xf32>
    %cst_48 = arith.constant 0.000000e+00 : f32
    %71 = vector.broadcast %cst_48 : f32 to vector<4x256xf32>
    %72 = arith.select %30, %70, %71 : vector<4x256xi1>, vector<4x256xf32>
    %c6 = arith.constant 6 : index
    %c0_49 = arith.constant 0 : index
    %c0_50 = arith.constant 0 : index
    %73 = vector.load %arg2[%c6, %c0_49, %c0_50] : memref<9x8x4xf32, #tpu.memory_space<vmem>>, vector<1x8x4xf32>
    %74 = vector.shape_cast %73 : vector<1x8x4xf32> to vector<8x4xf32>
    %cst_51 = arith.constant dense<0.000000e+00> : vector<8x256xf32>
    %75 = tpu.matmul %74, %72, %cst_51 {dimension_numbers = #tpu.dot_dimension_numbers<[1], [0], [0], [1], [0, 0, 1, 1], [], []>} : vector<8x4xf32>, vector<4x256xf32>, vector<8x256xf32> -> vector<8x256xf32>
    %76 = arith.addf %69, %75 : vector<8x256xf32>
    %c0_52 = arith.constant 0 : index
    %c144 = arith.constant 144 : index
    %77 = vector.load %arg5[%c0_52, %c144] : memref<4x401xf32, #tpu.memory_space<vmem>>, vector<4x256xf32>
    %c7 = arith.constant 7 : index
    %c0_53 = arith.constant 0 : index
    %c0_54 = arith.constant 0 : index
    %78 = vector.load %arg2[%c7, %c0_53, %c0_54] : memref<9x8x4xf32, #tpu.memory_space<vmem>>, vector<1x8x4xf32>
    %79 = vector.shape_cast %78 : vector<1x8x4xf32> to vector<8x4xf32>
    %cst_55 = arith.constant dense<0.000000e+00> : vector<8x256xf32>
    %80 = tpu.matmul %79, %77, %cst_55 {dimension_numbers = #tpu.dot_dimension_numbers<[1], [0], [0], [1], [0, 0, 1, 1], [], []>} : vector<8x4xf32>, vector<4x256xf32>, vector<8x256xf32> -> vector<8x256xf32>
    %81 = arith.addf %76, %80 : vector<8x256xf32>
    %c0_56 = arith.constant 0 : index
    %c145 = arith.constant 145 : index
    %82 = vector.load %arg5[%c0_56, %c145] : memref<4x401xf32, #tpu.memory_space<vmem>>, vector<4x256xf32>
    %cst_57 = arith.constant 0.000000e+00 : f32
    %83 = vector.broadcast %cst_57 : f32 to vector<4x256xf32>
    %84 = arith.select %32, %82, %83 : vector<4x256xi1>, vector<4x256xf32>
    %c8 = arith.constant 8 : index
    %c0_58 = arith.constant 0 : index
    %c0_59 = arith.constant 0 : index
    %85 = vector.load %arg2[%c8, %c0_58, %c0_59] : memref<9x8x4xf32, #tpu.memory_space<vmem>>, vector<1x8x4xf32>
    %86 = vector.shape_cast %85 : vector<1x8x4xf32> to vector<8x4xf32>
    %cst_60 = arith.constant dense<0.000000e+00> : vector<8x256xf32>
    %87 = tpu.matmul %86, %84, %cst_60 {dimension_numbers = #tpu.dot_dimension_numbers<[1], [0], [0], [1], [0, 0, 1, 1], [], []>} : vector<8x4xf32>, vector<4x256xf32>, vector<8x256xf32> -> vector<8x256xf32>
    %88 = arith.addf %81, %87 : vector<8x256xf32>
    %c0_61 = arith.constant 0 : index
    %c0_62 = arith.constant 0 : index
    %89 = vector.load %arg3[%c0_61, %c0_62] : memref<8x1xf32, #tpu.memory_space<vmem>>, vector<8x1xf32>
    %90 = vector.broadcast %89 : vector<8x1xf32> to vector<8x256xf32>
    %91 = arith.addf %88, %90 : vector<8x256xf32>
    %cst_63 = arith.constant 0.000000e+00 : f32
    %92 = vector.broadcast %cst_63 : f32 to vector<8x256xf32>
    %93 = arith.maximumf %91, %92 : vector<8x256xf32>
    %c0_64 = arith.constant 0 : index
    %c4_65 = arith.constant 4 : index
    %c0_66 = arith.constant 0 : index
    %94 = vector.load %arg4[%c0_64, %c4_65, %c0_66] : memref<1x12x256xf32, #tpu.memory_space<vmem>>, vector<1x8x256xf32>
    %95 = vector.shape_cast %94 : vector<1x8x256xf32> to vector<8x256xf32>
    %96 = vector.shape_cast %93 : vector<8x256xf32> to vector<1x8x256xf32>
    tpu.vector_store %arg4[%c0_64, %c4_65, %c0_66], %96 {strides = array<i32>} : memref<1x12x256xf32, #tpu.memory_space<vmem>>, vector<1x8x256xf32>,
    return
  }
  func.func @transform_0(%arg0: i32) -> (i32, i32, i32) {
    %c0_i32 = arith.constant 0 : i32
    %c0_i32_0 = arith.constant 0 : i32
    %c0_i32_1 = arith.constant 0 : i32
    return %arg0, %c0_i32, %c0_i32_0 : i32, i32, i32
  }
  func.func @transform_1(%arg0: i32) -> (i32, i32, i32) {
    %c0_i32 = arith.constant 0 : i32
    %c0_i32_0 = arith.constant 0 : i32
    %c0_i32_1 = arith.constant 0 : i32
    %c0_i32_2 = arith.constant 0 : i32
    return %c0_i32, %c0_i32_0, %c0_i32_1 : i32, i32, i32
  }
  func.func @transform_2(%arg0: i32) -> (i32, i32) {
    %c0_i32 = arith.constant 0 : i32
    %c0_i32_0 = arith.constant 0 : i32
    %c0_i32_1 = arith.constant 0 : i32
    return %c0_i32, %c0_i32_0 : i32, i32
  }
  func.func @transform_3(%arg0: i32) -> (i32, i32, i32) {
    %c0_i32 = arith.constant 0 : i32
    %c0_i32_0 = arith.constant 0 : i32
    %c0_i32_1 = arith.constant 0 : i32
    return %arg0, %c0_i32, %c0_i32_0 : i32, i32, i32
  }
}

</mosaic_0001>

<llo_original>
// kernel: tpu_custom_call.1
$region0: #{tpu_custom_call.1}
  #allocation0 [shape = 'u32[]', space=smem, size = 0x4, offset = 0x4, fixed_abs, tag = 'smem constant byte address 0x4 - core index']
  #allocation1 [shape = 'u32[72,128]{1,0:T(1,128)}', space=vmem, size = 0x9000, scoped, tag = 'internal scratch']
  #allocation2 [shape = 'f32[4,401]{1,0:T(4,128)}', space=vmem, size = 0x2000, scoped, tag = 'scratch operand']
  %s0 = inlined_call_operand.vmem [shape: f32[2,4,256], index: 0, kind: input, shape index: {}]
  %s1 = inlined_call_operand.vmem [shape: f32[9,8,4], index: 1, kind: input, shape index: {}]
  %s2 = inlined_call_operand.vmem [shape: f32[8,1], index: 2, kind: input, shape index: {}]
  %s3 = inlined_call_operand.vmem [shape: f32[2,12,256], index: 3, kind: output, shape index: {}]
  %s4 = sld [smem:[#allocation0]]
  $region45: #{tpu_custom_call.1} parent=0
    _
  %s6 = ssub.s32 1, %s4
  %s7 = scalar_select 0, %s6, %s4
  loop: start=0, step=1, limit=4
  $region2: #{tpu_custom_call.1} parent=0 // loop_pre_header
    _
  $region3: #{tpu_custom_call.1} parent=0 // loop_header
    %s9 = sphi 0, %s13
    %p10 = scmp.ge.s32.totalorder %s9, 4
    %s19 = sphi 0, %s21
    %s22 = sphi 0, %s19
    %s23 = sphi 0, %s22
    %s39 = sphi 0, %s23
    %s43 = sphi 0, %s43
    %s45 = sphi 0, %s43
    %s46 = sphi 0, %s45
    %s60 = sphi 0, %s46
    %s64 = sphi 0, %s64
    %s66 = sphi 0, %s64
    %s67 = sphi 0, %s66
    %s81 = sphi 0, %s67
    %s87 = sphi 0, %s89
    %s90 = sphi 0, %s87
    %s91 = sphi 0, %s90
    %s107 = sphi 0, %s91
  $region4: #{tpu_custom_call.1} parent=0 // loop_header_branch
    %12 = sbr.rel (%p10) target = $region8
  $region5: #{tpu_custom_call.1} parent=0 // loop_body
    %s14 = ssub.s32 %s9, 1
    %s15 = ssub.s32 %s9, 2
    %s16 = sadd.s32 %s9, 1
    %s17 = ssub.s32 %s9, %s16
    %p18 = scmp.eq.s32.totalorder %s17, 0
    %s20 = sadd.s32 %s19, 1
    %s21 = scalar_select %p18, %s19, %s20
    %p24 = pneg %p18
    %p25 = scmp.eq.s32.totalorder %s9, 1
    %p26 = por %p24, %p25
    %p27 = scmp.ne.s32.totalorder %s19, %s22
    %p28 = scmp.eq.s32.totalorder %s9, 0
    %p29 = por %p27, %p28
    %p30 = scmp.ne.s32.totalorder %s19, %s22
    %p31 = scmp.eq.s32.totalorder %s14, 1
    %p32 = por %p30, %p31
    %p33 = scmp.ne.s32.totalorder %s22, %s23
    %p34 = scmp.eq.s32.totalorder %s14, 0
    %p35 = por %p33, %p34
    %p36 = scmp.ne.s32.totalorder %s22, %s23
    %p37 = scmp.eq.s32.totalorder %s15, 1
    %p38 = por %p36, %p37
    %p40 = scmp.ne.s32.totalorder %s23, %s39
    %p41 = scmp.eq.s32.totalorder %s15, 0
    %p42 = por %p40, %p41
    %s44 = sadd.s32 %s43, 1
    %p47 = scmp.eq.s32.totalorder %s9, 1
    %p48 = scmp.ne.s32.totalorder %s43, %s45
    %p49 = scmp.eq.s32.totalorder %s9, 0
    %p50 = por %p48, %p49
    %p51 = scmp.ne.s32.totalorder %s43, %s45
    %p52 = scmp.eq.s32.totalorder %s14, 1
    %p53 = por %p51, %p52
    %p54 = scmp.ne.s32.totalorder %s45, %s46
    %p55 = scmp.eq.s32.totalorder %s14, 0
    %p56 = por %p54, %p55
    %p57 = scmp.ne.s32.totalorder %s45, %s46
    %p58 = scmp.eq.s32.totalorder %s15, 1
    %p59 = por %p57, %p58
    %p61 = scmp.ne.s32.totalorder %s46, %s60
    %p62 = scmp.eq.s32.totalorder %s15, 0
    %p63 = por %p61, %p62
    %s65 = sadd.s32 %s64, 1
    %p68 = scmp.eq.s32.totalorder %s9, 1
    %p69 = scmp.ne.s32.totalorder %s64, %s66
    %p70 = scmp.eq.s32.totalorder %s9, 0
    %p71 = por %p69, %p70
    %p72 = scmp.ne.s32.totalorder %s64, %s66
    %p73 = scmp.eq.s32.totalorder %s14, 1
    %p74 = por %p72, %p73
    %p75 = scmp.ne.s32.totalorder %s66, %s67
    %p76 = scmp.eq.s32.totalorder %s14, 0
    %p77 = por %p75, %p76
    %p78 = scmp.ne.s32.totalorder %s66, %s67
    %p79 = scmp.eq.s32.totalorder %s15, 1
    %p80 = por %p78, %p79
    %p82 = scmp.ne.s32.totalorder %s67, %s81
    %p83 = scmp.eq.s32.totalorder %s15, 0
    %p84 = por %p82, %p83
    %s85 = ssub.s32 %s9, %s16
    %p86 = scmp.eq.s32.totalorder %s85, 0
    %s88 = sadd.s32 %s87, 1
    %s89 = scalar_select %p86, %s87, %s88
    %p92 = pneg %p86
    %p93 = scmp.eq.s32.totalorder %s9, 1
    %p94 = por %p92, %p93
    %p95 = scmp.ne.s32.totalorder %s87, %s90
    %p96 = scmp.eq.s32.totalorder %s9, 0
    %p97 = por %p95, %p96
    %p98 = scmp.ne.s32.totalorder %s87, %s90
    %p99 = scmp.eq.s32.totalorder %s14, 1
    %p100 = por %p98, %p99
    %p101 = scmp.ne.s32.totalorder %s90, %s91
    %p102 = scmp.eq.s32.totalorder %s14, 0
    %p103 = por %p101, %p102
    %p104 = scmp.ne.s32.totalorder %s90, %s91
    %p105 = scmp.eq.s32.totalorder %s15, 1
    %p106 = por %p104, %p105
    %p108 = scmp.ne.s32.totalorder %s91, %s107
    %p109 = scmp.eq.s32.totalorder %s15, 0
    %p110 = por %p108, %p109
    %p111 = scmp.le.s32.totalorder 1, %s9
    %p112 = scmp.lt.s32.totalorder %s9, 3
    %p113 = pnand %p111, %p112
    %p114 = pneg %p113
    // Predicated region
    $region9: #{tpu_custom_call.1} parent=5 // pred_check
      _
    $region10: #{tpu_custom_call.1} parent=5 // pred_check_branch
      %116 = sbr.rel (%p113) target = $region12
    $region11: #{tpu_custom_call.1} parent=5 // pred_region
      %s117 = ssub.s32 %s9, 1
      // Predicated region
      $region13: #{tpu_custom_call.1} parent=11 // pred_check
        %p118 = pneg %p56
      $region14: #{tpu_custom_call.1} parent=11 // pred_check_branch
        %120 = sbr.rel (%p118) target = $region16
      $region15: #{tpu_custom_call.1} parent=11 // pred_region
        _
      $region16: #{tpu_custom_call.1} parent=11 // pred_fallthru
        _
      // Predicated region
      $region17: #{tpu_custom_call.1} parent=11 // pred_check
        %p121 = pneg %p77
      $region18: #{tpu_custom_call.1} parent=11 // pred_check_branch
        %123 = sbr.rel (%p121) target = $region20
      $region19: #{tpu_custom_call.1} parent=11 // pred_region
        _
      $region20: #{tpu_custom_call.1} parent=11 // pred_fallthru
        _
    $region12: #{tpu_custom_call.1} parent=5 // pred_fallthru
      _
    %p124 = scmp.lt.s32.totalorder %s9, 2
    // Predicated region
    $region21: #{tpu_custom_call.1} parent=5 // pred_check
      %p125 = pneg %p124
    $region22: #{tpu_custom_call.1} parent=5 // pred_check_branch
      %127 = sbr.rel (%p125) target = $region24
    $region23: #{tpu_custom_call.1} parent=5 // pred_region
      // Predicated region
      $region25: #{tpu_custom_call.1} parent=23 // pred_check
        %p128 = pneg %p29
      $region26: #{tpu_custom_call.1} parent=23 // pred_check_branch
        %130 = sbr.rel (%p128) target = $region28
      $region27: #{tpu_custom_call.1} parent=23 // pred_region
        %p131 = scmp.lt.s32.totalorder %s9, 1
        %s132 = scalar_select %p131, %s9, 1
        %s133 = smul.addr %s132, 2
        %s134 = smul.addr %s133, 4
        %s135 = scalar_lea.vmem %s0, %s134
      $region28: #{tpu_custom_call.1} parent=23 // pred_fallthru
        _
    $region24: #{tpu_custom_call.1} parent=5 // pred_fallthru
      _
    %p136 = scmp.le.s32.totalorder 1, %s9
    %p137 = scmp.lt.s32.totalorder %s9, 3
    %p138 = pnand %p136, %p137
    %p139 = pneg %p138
    // Predicated region
    $region29: #{tpu_custom_call.1} parent=5 // pred_check
      _
    $region30: #{tpu_custom_call.1} parent=5 // pred_check_branch
      %141 = sbr.rel (%p138) target = $region32
    $region31: #{tpu_custom_call.1} parent=5 // pred_region
      %s142 = ssub.s32 %s9, 1
      %p143 = scmp.lt.s32.totalorder %s14, 1
      %s144 = scalar_select %p143, %s14, 1
      %s145 = smul.addr %s144, 2
      %s146 = smul.addr %s145, 4
      %s147 = scalar_lea.vmem %s0, %s146
      %p148 = pneg %p35
      %p149 = pneg %p32
      %p150 = pneg %p56
      %p151 = pneg %p53
      %p152 = pneg %p77
      %p153 = pneg %p74
      %p154 = pneg %p103
      %p155 = pneg %p100
      %p156 = scmp.lt.s32.totalorder %s14, 1
      %s157 = scalar_select %p156, %s14, 1
      %s158 = smul.addr %s157, 4
      %s159 = smul.addr %s158, 8
      %s160 = scalar_lea.vmem %s3, %s159
      %p161 = scmp.lt.s32.totalorder %s14, 1
      %s162 = scalar_select %p161, %s14, 1
      %s163 = smul.addr %s162, 2
      %s164 = smul.addr %s163, 4
      %s165 = scalar_lea.vmem %s0, %s164
      %p166 = scmp.lt.s32.totalorder %s14, 1
      %s167 = scalar_select %p166, %s14, 1
      %s168 = smul.addr %s167, 4
      %s169 = smul.addr %s168, 8
      %s170 = scalar_lea.vmem %s3, %s169
      %v171 = vld [vmem:[%s165] sm:$0xff]
      %173 = vst [vmem:[#allocation1] ss:$2 sm:$0xff] %v171
      %v174 = vld.sshfl [vmem:[#allocation1] sm:$0xff pattern:$0x75316420]
      %v175 = vld.sshfl [vmem:[#allocation1 + $0x8] sm:$0xff pattern:$0x75316420]
      %178 = vst [vmem:[%s170] sm:$0xf] %v174
      %179 = vst [vmem:[%s170 + $0x8] sm:$0xf] %v175
      %180 = vst [vmem:[#allocation2] sm:$0xf] 0.0
      %vm181 = vcmask 134144
      %182 = vst.msk [vmem:[#allocation2 + $0xc] sm:$0xf] %vm181, 0.0
      %v183 = vld [vmem:[%s165] sm:$0xff]
      %184 = vst [vmem:[#allocation2 + $0x4] sm:$0xff] %v183
      %v185 = vlaneseq
      %v186 = vand.u32 %v185, 127
      %v187 = vadd.s32 %v186, 128
      %vm188 = vcmp.lt.s32.totalorder %v186, 0
      %v189 = vsub.s32 0, %v186
      %v190 = vsel %vm188, %v189, %v186
      %v191 = vshrl.u32 %v190, 4
      %v192 = vand.u32 %v190, 15
      %v193 = vsub.s32 0, %v192
      %v194 = vsel %vm188, %v193, %v192
      %vm195 = vcmp.lt.s32.totalorder %v187, 0
      %v196 = vsub.s32 0, %v187
      %v197 = vsel %vm195, %v196, %v187
      %v198 = vshrl.u32 %v197, 4
      %v199 = vand.u32 %v197, 15
      %v200 = vsub.s32 0, %v199
      %v201 = vsel %vm195, %v200, %v199
      %vm202 = vcmp.ne.s32.totalorder %v194, 0
      %vm203 = vcmp.ne.s32.totalorder %v201, 0
      %vm204 = vcmp.lt.s32.totalorder %v194, 0
      %vm205 = vcmp.lt.s32.totalorder %v201, 0
      %vm206 = vmand %vm204, %vm202
      %vm207 = vmand %vm205, %vm203
      %v208 = vadd.s32 %v194, 16
      %v209 = vadd.s32 %v201, 16
      %v210 = vsel %vm206, %v208, %v194
      %v211 = vsel %vm207, %v209, %v201
      %vm212 = vcmp.ge.s32.totalorder %v210, 1
      %vm213 = vcmp.ge.s32.totalorder %v211, 1
      %vm214 = vcmp.le.s32.totalorder %v210, 14
      %vm215 = vcmp.le.s32.totalorder %v211, 14
      %v216 = vld [vmem:[#allocation2] sm:$0xff]
      %v217 = vld [vmem:[#allocation2 + $0x8] sm:$0xf]
      %220 = vst [vmem:[#allocation1] ss:$2 sm:$0xff] %v216
      %s221 = scalar_lea.vmem [#allocation1], 16
      %222 = vst [vmem:[%s221] ss:$2 sm:$0xff] %v217
      %v223 = vld.sshfl [vmem:[#allocation1] sm:$0xff pattern:$0x75316420]
      %v224 = vld.sshfl [vmem:[#allocation1 + $0x8] sm:$0xff pattern:$0x75316420]
      %v225 = vld.sshfl [vmem:[#allocation1 + $0x10] sm:$0xff pattern:$0x75316420]
      %226 = vrot.lane.b32.xlu0 %v223, 17
      %v227 = vpop.permute.xlu0 %226
      %228 = vrot.lane.b32.xlu0 %v224, 17
      %v229 = vpop.permute.xlu0 %228
      %230 = vrot.lane.b32.xlu0 %v225, 17
      %v231 = vpop.permute.xlu0 %230
      %vm232 = vcmask 138240
      %v233 = vsel %vm232, %v227, %v229
      %v234 = vsel %vm232, %v229, %v231
      %v237 = vsel %vm212, %v233, 0.0
      %v238 = vsel %vm213, %v234, 0.0
      %v239 = vld [vmem:[%s1] sm:$0xff]
      %v240 = vld [vmem:[#allocation2] sm:$0xff]
      %v241 = vld [vmem:[#allocation2 + $0x8] sm:$0xf]
      %s242 = scalar_lea.vmem %s1, 8
      %v243 = vld [vmem:[%s242] sm:$0xff]
      %246 = vst [vmem:[#allocation1] ss:$2 sm:$0xff] %v240
      %s247 = scalar_lea.vmem [#allocation1], 16
      %248 = vst [vmem:[%s247] ss:$2 sm:$0xff] %v241
      %v249 = vld.sshfl [vmem:[#allocation1] sm:$0xff pattern:$0x75316420]
      %v250 = vld.sshfl [vmem:[#allocation1 + $0x8] sm:$0xff pattern:$0x75316420]
      %v251 = vld.sshfl [vmem:[#allocation1 + $0x10] sm:$0xff pattern:$0x75316420]
      %252 = vrot.lane.b32.xlu0 %v249, 16
      %v253 = vpop.permute.xlu0 %252
      %254 = vrot.lane.b32.xlu0 %v250, 16
      %v255 = vpop.permute.xlu0 %254
      %256 = vrot.lane.b32.xlu0 %v251, 16
      %v257 = vpop.permute.xlu0 %256
      %vm258 = vcmask 130048
      %v259 = vsel %vm258, %v253, %v255
      %v260 = vsel %vm258, %v255, %v257
      %vm261 = vcmask 31744
      %v263 = vsel %vm261, %v243, 0
      %vm265 = vcmask 1043456
      %v266 = vsel %vm265, %v259, 0
      %v268 = vsel %vm265, %v260, 0
      %270 = vmatpush.msra.mxu0 0.0
      %271 = vmatpush.msra.mxu0 0.0
      %272 = vmatpush.msra.mxu0 0.0
      %273 = vmatpush.msra.mxu0 0.0
      %274 = vmatpush.msra.mxu0 0.0
      %275 = vmatpush.msra.mxu0 0.0
      %276 = vmatpush.msra.mxu0 0.0
      %277 = vmatpush.msra.mxu0 0.0
      %278 = vmatpush.msra.mxu0 0.0
      %279 = vmatpush.msra.mxu0 0.0
      %280 = vmatpush.msra.mxu0 0.0
      %281 = vmatpush.msra.mxu0 0.0
      %282 = vmatpush.msra.mxu0 0.0
      %283 = vmatpush.msra.mxu0 0.0
      %284 = vmatpush.msra.mxu0 0.0
      %285 = vmatpush.msra.mxu0 %v266
      %286 = vmatmul.f32.gmra.mxu0 %v263
      %v287 = vpop.f32.mrf.mxu0
      %v288 = vadd.f32 0.0, %v287
      %289 = vdwg.mxu0
      %290 = vmatpush.msra.mxu0 0.0
      %291 = vmatpush.msra.mxu0 0.0
      %292 = vmatpush.msra.mxu0 0.0
      %293 = vmatpush.msra.mxu0 0.0
      %294 = vmatpush.msra.mxu0 0.0
      %295 = vmatpush.msra.mxu0 0.0
      %296 = vmatpush.msra.mxu0 0.0
      %297 = vmatpush.msra.mxu0 0.0
      %298 = vmatpush.msra.mxu0 0.0
      %299 = vmatpush.msra.mxu0 0.0
      %300 = vmatpush.msra.mxu0 0.0
      %301 = vmatpush.msra.mxu0 0.0
      %302 = vmatpush.msra.mxu0 0.0
      %303 = vmatpush.msra.mxu0 0.0
      %304 = vmatpush.msra.mxu0 0.0
      %305 = vmatpush.msra.mxu0 %v268
      %306 = vmatmul.f32.gmra.mxu0 %v263
      %v307 = vpop.f32.mrf.mxu0
      %v308 = vadd.f32 0.0, %v307
      %309 = vdwg.mxu0
      %v311 = vsel %vm261, %v239, 0
      %v314 = vsel %vm265, %v237, 0
      %v317 = vsel %vm265, %v238, 0
      %319 = vmatpush.msra.mxu0 0.0
      %320 = vmatpush.msra.mxu0 0.0
      %321 = vmatpush.msra.mxu0 0.0
      %322 = vmatpush.msra.mxu0 0.0
      %323 = vmatpush.msra.mxu0 0.0
      %324 = vmatpush.msra.mxu0 0.0
      %325 = vmatpush.msra.mxu0 0.0
      %326 = vmatpush.msra.mxu0 0.0
      %327 = vmatpush.msra.mxu0 0.0
      %328 = vmatpush.msra.mxu0 0.0
      %329 = vmatpush.msra.mxu0 0.0
      %330 = vmatpush.msra.mxu0 0.0
      %331 = vmatpush.msra.mxu0 0.0
      %332 = vmatpush.msra.mxu0 0.0
      %333 = vmatpush.msra.mxu0 0.0
      %334 = vmatpush.msra.mxu0 %v314
      %335 = vmatmul.f32.gmra.mxu0 %v311
      %v336 = vpop.f32.mrf.mxu0
      %v337 = vadd.f32 %v288, %v336
      %338 = vdwg.mxu0
      %339 = vmatpush.msra.mxu0 0.0
      %340 = vmatpush.msra.mxu0 0.0
      %341 = vmatpush.msra.mxu0 0.0
      %342 = vmatpush.msra.mxu0 0.0
      %343 = vmatpush.msra.mxu0 0.0
      %344 = vmatpush.msra.mxu0 0.0
      %345 = vmatpush.msra.mxu0 0.0
      %346 = vmatpush.msra.mxu0 0.0
      %347 = vmatpush.msra.mxu0 0.0
      %348 = vmatpush.msra.mxu0 0.0
      %349 = vmatpush.msra.mxu0 0.0
      %350 = vmatpush.msra.mxu0 0.0
      %351 = vmatpush.msra.mxu0 0.0
      %352 = vmatpush.msra.mxu0 0.0
      %353 = vmatpush.msra.mxu0 0.0
      %354 = vmatpush.msra.mxu0 %v317
      %355 = vmatmul.f32.gmra.mxu0 %v311
      %v356 = vpop.f32.mrf.mxu0
      %v357 = vadd.f32 %v308, %v356
      %358 = vdwg.mxu0
      %v359 = vld [vmem:[#allocation2] sm:$0xff]
      %v360 = vld [vmem:[#allocation2 + $0x8] sm:$0xf]
      %363 = vst [vmem:[#allocation1] ss:$2 sm:$0xff] %v359
      %s364 = scalar_lea.vmem [#allocation1], 16
      %365 = vst [vmem:[%s364] ss:$2 sm:$0xff] %v360
      %v366 = vld.sshfl [vmem:[#allocation1] sm:$0xff pattern:$0x75316420]
      %v367 = vld.sshfl [vmem:[#allocation1 + $0x8] sm:$0xff pattern:$0x75316420]
      %v368 = vld.sshfl [vmem:[#allocation1 + $0x10] sm:$0xff pattern:$0x75316420]
      %369 = vrot.lane.b32.xlu0 %v366, 15
      %v370 = vpop.permute.xlu0 %369
      %371 = vrot.lane.b32.xlu0 %v367, 15
      %v372 = vpop.permute.xlu0 %371
      %373 = vrot.lane.b32.xlu0 %v368, 15
      %v374 = vpop.permute.xlu0 %373
      %vm375 = vcmask 121856
      %v376 = vsel %vm375, %v370, %v372
      %v377 = vsel %vm375, %v372, %v374
      %v380 = vsel %vm214, %v376, 0.0
      %v381 = vsel %vm215, %v377, 0.0
      %s382 = scalar_lea.vmem %s1, 16
      %v383 = vld [vmem:[%s382] sm:$0xff]
      %v385 = vsel %vm261, %v383, 0
      %v388 = vsel %vm265, %v380, 0
      %v391 = vsel %vm265, %v381, 0
      %393 = vmatpush.msra.mxu0 0.0
      %394 = vmatpush.msra.mxu0 0.0
      %395 = vmatpush.msra.mxu0 0.0
      %396 = vmatpush.msra.mxu0 0.0
      %397 = vmatpush.msra.mxu0 0.0
      %398 = vmatpush.msra.mxu0 0.0
      %399 = vmatpush.msra.mxu0 0.0
      %400 = vmatpush.msra.mxu0 0.0
      %401 = vmatpush.msra.mxu0 0.0
      %402 = vmatpush.msra.mxu0 0.0
      %403 = vmatpush.msra.mxu0 0.0
      %404 = vmatpush.msra.mxu0 0.0
      %405 = vmatpush.msra.mxu0 0.0
      %406 = vmatpush.msra.mxu0 0.0
      %407 = vmatpush.msra.mxu0 0.0
      %408 = vmatpush.msra.mxu0 %v388
      %409 = vmatmul.f32.gmra.mxu0 %v385
      %v410 = vpop.f32.mrf.mxu0
      %v411 = vadd.f32 0.0, %v410
      %412 = vdwg.mxu0
      %413 = vmatpush.msra.mxu0 0.0
      %414 = vmatpush.msra.mxu0 0.0
      %415 = vmatpush.msra.mxu0 0.0
      %416 = vmatpush.msra.mxu0 0.0
      %417 = vmatpush.msra.mxu0 0.0
      %418 = vmatpush.msra.mxu0 0.0
      %419 = vmatpush.msra.mxu0 0.0
      %420 = vmatpush.msra.mxu0 0.0
      %421 = vmatpush.msra.mxu0 0.0
      %422 = vmatpush.msra.mxu0 0.0
      %423 = vmatpush.msra.mxu0 0.0
      %424 = vmatpush.msra.mxu0 0.0
      %425 = vmatpush.msra.mxu0 0.0
      %426 = vmatpush.msra.mxu0 0.0
      %427 = vmatpush.msra.mxu0 0.0
      %428 = vmatpush.msra.mxu0 %v391
      %429 = vmatmul.f32.gmra.mxu0 %v385
      %v430 = vpop.f32.mrf.mxu0
      %v431 = vadd.f32 0.0, %v430
      %432 = vdwg.mxu0
      %v433 = vadd.f32 %v337, %v411
      %v434 = vadd.f32 %v357, %v431
      %v435 = vld [vmem:[#allocation2] sm:$0xff]
      %v436 = vld [vmem:[#allocation2 + $0x8] sm:$0xf]
      %439 = vst [vmem:[#allocation1] ss:$2 sm:$0xff] %v435
      %s440 = scalar_lea.vmem [#allocation1], 16
      %441 = vst [vmem:[%s440] ss:$2 sm:$0xff] %v436
      %v442 = vld.sshfl [vmem:[#allocation1] sm:$0xff pattern:$0x75316420]
      %v443 = vld.sshfl [vmem:[#allocation1 + $0x8] sm:$0xff pattern:$0x75316420]
      %v444 = vld.sshfl [vmem:[#allocation1 + $0x10] sm:$0xff pattern:$0x75316420]
      %445 = vrot.lane.b32.xlu0 %v442, 1
      %v446 = vpop.permute.xlu0 %445
      %447 = vrot.lane.b32.xlu0 %v443, 1
      %v448 = vpop.permute.xlu0 %447
      %449 = vrot.lane.b32.xlu0 %v444, 1
      %v450 = vpop.permute.xlu0 %449
      %vm451 = vcmask 7168
      %v452 = vsel %vm451, %v446, %v448
      %v453 = vsel %vm451, %v448, %v450
      %v456 = vsel %vm212, %v452, 0.0
      %v457 = vsel %vm213, %v453, 0.0
      %s458 = scalar_lea.vmem %s1, 24
      %v459 = vld [vmem:[%s458] sm:$0xff]
      %v461 = vsel %vm261, %v459, 0
      %v464 = vsel %vm265, %v456, 0
      %v467 = vsel %vm265, %v457, 0
      %469 = vmatpush.msra.mxu0 0.0
      %470 = vmatpush.msra.mxu0 0.0
      %471 = vmatpush.msra.mxu0 0.0
      %472 = vmatpush.msra.mxu0 0.0
      %473 = vmatpush.msra.mxu0 0.0
      %474 = vmatpush.msra.mxu0 0.0
      %475 = vmatpush.msra.mxu0 0.0
      %476 = vmatpush.msra.mxu0 0.0
      %477 = vmatpush.msra.mxu0 0.0
      %478 = vmatpush.msra.mxu0 0.0
      %479 = vmatpush.msra.mxu0 0.0
      %480 = vmatpush.msra.mxu0 0.0
      %481 = vmatpush.msra.mxu0 0.0
      %482 = vmatpush.msra.mxu0 0.0
      %483 = vmatpush.msra.mxu0 0.0
      %484 = vmatpush.msra.mxu0 %v464
      %485 = vmatmul.f32.gmra.mxu0 %v461
      %v486 = vpop.f32.mrf.mxu0
      %v487 = vadd.f32 0.0, %v486
      %488 = vdwg.mxu0
      %489 = vmatpush.msra.mxu0 0.0
      %490 = vmatpush.msra.mxu0 0.0
      %491 = vmatpush.msra.mxu0 0.0
      %492 = vmatpush.msra.mxu0 0.0
      %493 = vmatpush.msra.mxu0 0.0
      %494 = vmatpush.msra.mxu0 0.0
      %495 = vmatpush.msra.mxu0 0.0
      %496 = vmatpush.msra.mxu0 0.0
      %497 = vmatpush.msra.mxu0 0.0
      %498 = vmatpush.msra.mxu0 0.0
      %499 = vmatpush.msra.mxu0 0.0
      %500 = vmatpush.msra.mxu0 0.0
      %501 = vmatpush.msra.mxu0 0.0
      %502 = vmatpush.msra.mxu0 0.0
      %503 = vmatpush.msra.mxu0 0.0
      %504 = vmatpush.msra.mxu0 %v467
      %505 = vmatmul.f32.gmra.mxu0 %v461
      %v506 = vpop.f32.mrf.mxu0
      %v507 = vadd.f32 0.0, %v506
      %508 = vdwg.mxu0
      %v509 = vadd.f32 %v433, %v487
      %v510 = vadd.f32 %v434, %v507
      %v511 = vld [vmem:[#allocation2 + $0x4] sm:$0xff]
      %s512 = scalar_lea.vmem %s1, 32
      %v513 = vld [vmem:[%s512] sm:$0xff]
      %515 = vst [vmem:[#allocation1] ss:$2 sm:$0xff] %v511
      %v516 = vld.sshfl [vmem:[#allocation1] sm:$0xff pattern:$0x75316420]
      %v517 = vld.sshfl [vmem:[#allocation1 + $0x8] sm:$0xff pattern:$0x75316420]
      %v519 = vsel %vm261, %v513, 0
      %v521 = vsel %vm265, %v516, 0
      %v523 = vsel %vm265, %v517, 0
      %525 = vmatpush.msra.mxu0 0.0
      %526 = vmatpush.msra.mxu0 0.0
      %527 = vmatpush.msra.mxu0 0.0
      %528 = vmatpush.msra.mxu0 0.0
      %529 = vmatpush.msra.mxu0 0.0
      %530 = vmatpush.msra.mxu0 0.0
      %531 = vmatpush.msra.mxu0 0.0
      %532 = vmatpush.msra.mxu0 0.0
      %533 = vmatpush.msra.mxu0 0.0
      %534 = vmatpush.msra.mxu0 0.0
      %535 = vmatpush.msra.mxu0 0.0
      %536 = vmatpush.msra.mxu0 0.0
      %537 = vmatpush.msra.mxu0 0.0
      %538 = vmatpush.msra.mxu0 0.0
      %539 = vmatpush.msra.mxu0 0.0
      %540 = vmatpush.msra.mxu0 %v521
      %541 = vmatmul.f32.gmra.mxu0 %v519
      %v542 = vpop.f32.mrf.mxu0
      %v543 = vadd.f32 0.0, %v542
      %544 = vdwg.mxu0
      %545 = vmatpush.msra.mxu0 0.0
      %546 = vmatpush.msra.mxu0 0.0
      %547 = vmatpush.msra.mxu0 0.0
      %548 = vmatpush.msra.mxu0 0.0
      %549 = vmatpush.msra.mxu0 0.0
      %550 = vmatpush.msra.mxu0 0.0
      %551 = vmatpush.msra.mxu0 0.0
      %552 = vmatpush.msra.mxu0 0.0
      %553 = vmatpush.msra.mxu0 0.0
      %554 = vmatpush.msra.mxu0 0.0
      %555 = vmatpush.msra.mxu0 0.0
      %556 = vmatpush.msra.mxu0 0.0
      %557 = vmatpush.msra.mxu0 0.0
      %558 = vmatpush.msra.mxu0 0.0
      %559 = vmatpush.msra.mxu0 0.0
      %560 = vmatpush.msra.mxu0 %v523
      %561 = vmatmul.f32.gmra.mxu0 %v519
      %v562 = vpop.f32.mrf.mxu0
      %v563 = vadd.f32 0.0, %v562
      %564 = vdwg.mxu0
      %v565 = vadd.f32 %v509, %v543
      %v566 = vadd.f32 %v510, %v563
      %v567 = vld [vmem:[#allocation2 + $0x4] sm:$0xff]
      %v568 = vld [vmem:[#allocation2 + $0xc] sm:$0xf]
      %571 = vst [vmem:[#allocation1] ss:$2 sm:$0xff] %v567
      %s572 = scalar_lea.vmem [#allocation1], 16
      %573 = vst [vmem:[%s572] ss:$2 sm:$0xff] %v568
      %v574 = vld.sshfl [vmem:[#allocation1] sm:$0xff pattern:$0x75316420]
      %v575 = vld.sshfl [vmem:[#allocation1 + $0x8] sm:$0xff pattern:$0x75316420]
      %v576 = vld.sshfl [vmem:[#allocation1 + $0x10] sm:$0xff pattern:$0x75316420]
      %577 = vrot.lane.b32.xlu0 %v574, 127
      %v578 = vpop.permute.xlu0 %577
      %579 = vrot.lane.b32.xlu0 %v575, 127
      %v580 = vpop.permute.xlu0 %579
      %581 = vrot.lane.b32.xlu0 %v576, 127
      %v582 = vpop.permute.xlu0 %581
      %vm583 = vcmask 1039360
      %v584 = vsel %vm583, %v578, %v580
      %v585 = vsel %vm583, %v580, %v582
      %v588 = vsel %vm214, %v584, 0.0
      %v589 = vsel %vm215, %v585, 0.0
      %s590 = scalar_lea.vmem %s1, 40
      %v591 = vld [vmem:[%s590] sm:$0xff]
      %v593 = vsel %vm261, %v591, 0
      %v596 = vsel %vm265, %v588, 0
      %v599 = vsel %vm265, %v589, 0
      %601 = vmatpush.msra.mxu0 0.0
      %602 = vmatpush.msra.mxu0 0.0
      %603 = vmatpush.msra.mxu0 0.0
      %604 = vmatpush.msra.mxu0 0.0
      %605 = vmatpush.msra.mxu0 0.0
      %606 = vmatpush.msra.mxu0 0.0
      %607 = vmatpush.msra.mxu0 0.0
      %608 = vmatpush.msra.mxu0 0.0
      %609 = vmatpush.msra.mxu0 0.0
      %610 = vmatpush.msra.mxu0 0.0
      %611 = vmatpush.msra.mxu0 0.0
      %612 = vmatpush.msra.mxu0 0.0
      %613 = vmatpush.msra.mxu0 0.0
      %614 = vmatpush.msra.mxu0 0.0
      %615 = vmatpush.msra.mxu0 0.0
      %616 = vmatpush.msra.mxu0 %v596
      %617 = vmatmul.f32.gmra.mxu0 %v593
      %v618 = vpop.f32.mrf.mxu0
      %v619 = vadd.f32 0.0, %v618
      %620 = vdwg.mxu0
      %621 = vmatpush.msra.mxu0 0.0
      %622 = vmatpush.msra.mxu0 0.0
      %623 = vmatpush.msra.mxu0 0.0
      %624 = vmatpush.msra.mxu0 0.0
      %625 = vmatpush.msra.mxu0 0.0
      %626 = vmatpush.msra.mxu0 0.0
      %627 = vmatpush.msra.mxu0 0.0
      %628 = vmatpush.msra.mxu0 0.0
      %629 = vmatpush.msra.mxu0 0.0
      %630 = vmatpush.msra.mxu0 0.0
      %631 = vmatpush.msra.mxu0 0.0
      %632 = vmatpush.msra.mxu0 0.0
      %633 = vmatpush.msra.mxu0 0.0
      %634 = vmatpush.msra.mxu0 0.0
      %635 = vmatpush.msra.mxu0 0.0
      %636 = vmatpush.msra.mxu0 %v599
      %637 = vmatmul.f32.gmra.mxu0 %v593
      %v638 = vpop.f32.mrf.mxu0
      %v639 = vadd.f32 0.0, %v638
      %640 = vdwg.mxu0
      %v641 = vadd.f32 %v565, %v619
      %v642 = vadd.f32 %v566, %v639
      %v643 = vld [vmem:[#allocation2 + $0x4] sm:$0xff]
      %v644 = vld [vmem:[#allocation2 + $0xc] sm:$0xf]
      %647 = vst [vmem:[#allocation1] ss:$2 sm:$0xff] %v643
      %s648 = scalar_lea.vmem [#allocation1], 16
      %649 = vst [vmem:[%s648] ss:$2 sm:$0xff] %v644
      %v650 = vld.sshfl [vmem:[#allocation1] sm:$0xff pattern:$0x75316420]
      %v651 = vld.sshfl [vmem:[#allocation1 + $0x8] sm:$0xff pattern:$0x75316420]
      %v652 = vld.sshfl [vmem:[#allocation1 + $0x10] sm:$0xff pattern:$0x75316420]
      %653 = vrot.lane.b32.xlu0 %v650, 113
      %v654 = vpop.permute.xlu0 %653
      %655 = vrot.lane.b32.xlu0 %v651, 113
      %v656 = vpop.permute.xlu0 %655
      %657 = vrot.lane.b32.xlu0 %v652, 113
      %v658 = vpop.permute.xlu0 %657
      %vm659 = vcmask 924672
      %v660 = vsel %vm659, %v654, %v656
      %v661 = vsel %vm659, %v656, %v658
      %v664 = vsel %vm212, %v660, 0.0
      %v665 = vsel %vm213, %v661, 0.0
      %s666 = scalar_lea.vmem %s1, 48
      %v667 = vld [vmem:[%s666] sm:$0xff]
      %v669 = vsel %vm261, %v667, 0
      %v672 = vsel %vm265, %v664, 0
      %v675 = vsel %vm265, %v665, 0
      %677 = vmatpush.msra.mxu0 0.0
      %678 = vmatpush.msra.mxu0 0.0
      %679 = vmatpush.msra.mxu0 0.0
      %680 = vmatpush.msra.mxu0 0.0
      %681 = vmatpush.msra.mxu0 0.0
      %682 = vmatpush.msra.mxu0 0.0
      %683 = vmatpush.msra.mxu0 0.0
      %684 = vmatpush.msra.mxu0 0.0
      %685 = vmatpush.msra.mxu0 0.0
      %686 = vmatpush.msra.mxu0 0.0
      %687 = vmatpush.msra.mxu0 0.0
      %688 = vmatpush.msra.mxu0 0.0
      %689 = vmatpush.msra.mxu0 0.0
      %690 = vmatpush.msra.mxu0 0.0
      %691 = vmatpush.msra.mxu0 0.0
      %692 = vmatpush.msra.mxu0 %v672
      %693 = vmatmul.f32.gmra.mxu0 %v669
      %v694 = vpop.f32.mrf.mxu0
      %v695 = vadd.f32 0.0, %v694
      %696 = vdwg.mxu0
      %697 = vmatpush.msra.mxu0 0.0
      %698 = vmatpush.msra.mxu0 0.0
      %699 = vmatpush.msra.mxu0 0.0
      %700 = vmatpush.msra.mxu0 0.0
      %701 = vmatpush.msra.mxu0 0.0
      %702 = vmatpush.msra.mxu0 0.0
      %703 = vmatpush.msra.mxu0 0.0
      %704 = vmatpush.msra.mxu0 0.0
      %705 = vmatpush.msra.mxu0 0.0
      %706 = vmatpush.msra.mxu0 0.0
      %707 = vmatpush.msra.mxu0 0.0
      %708 = vmatpush.msra.mxu0 0.0
      %709 = vmatpush.msra.mxu0 0.0
      %710 = vmatpush.msra.mxu0 0.0
      %711 = vmatpush.msra.mxu0 0.0
      %712 = vmatpush.msra.mxu0 %v675
      %713 = vmatmul.f32.gmra.mxu0 %v669
      %v714 = vpop.f32.mrf.mxu0
      %v715 = vadd.f32 0.0, %v714
      %716 = vdwg.mxu0
      %v717 = vadd.f32 %v641, %v695
      %v718 = vadd.f32 %v642, %v715
      %v719 = vld [vmem:[#allocation2 + $0x4] sm:$0xff]
      %v720 = vld [vmem:[#allocation2 + $0xc] sm:$0xf]
      %s721 = scalar_lea.vmem %s1, 56
      %v722 = vld [vmem:[%s721] sm:$0xff]
      %725 = vst [vmem:[#allocation1] ss:$2 sm:$0xff] %v719
      %s726 = scalar_lea.vmem [#allocation1], 16
      %727 = vst [vmem:[%s726] ss:$2 sm:$0xff] %v720
      %v728 = vld.sshfl [vmem:[#allocation1] sm:$0xff pattern:$0x75316420]
      %v729 = vld.sshfl [vmem:[#allocation1 + $0x8] sm:$0xff pattern:$0x75316420]
      %v730 = vld.sshfl [vmem:[#allocation1 + $0x10] sm:$0xff pattern:$0x75316420]
      %731 = vrot.lane.b32.xlu0 %v728, 112
      %v732 = vpop.permute.xlu0 %731
      %733 = vrot.lane.b32.xlu0 %v729, 112
      %v734 = vpop.permute.xlu0 %733
      %735 = vrot.lane.b32.xlu0 %v730, 112
      %v736 = vpop.permute.xlu0 %735
      %vm737 = vcmask 916480
      %v738 = vsel %vm737, %v732, %v734
      %v739 = vsel %vm737, %v734, %v736
      %v741 = vsel %vm261, %v722, 0
      %v743 = vsel %vm265, %v738, 0
      %v745 = vsel %vm265, %v739, 0
      %747 = vmatpush.msra.mxu0 0.0
      %748 = vmatpush.msra.mxu0 0.0
      %749 = vmatpush.msra.mxu0 0.0
      %750 = vmatpush.msra.mxu0 0.0
      %751 = vmatpush.msra.mxu0 0.0
      %752 = vmatpush.msra.mxu0 0.0
      %753 = vmatpush.msra.mxu0 0.0
      %754 = vmatpush.msra.mxu0 0.0
      %755 = vmatpush.msra.mxu0 0.0
      %756 = vmatpush.msra.mxu0 0.0
      %757 = vmatpush.msra.mxu0 0.0
      %758 = vmatpush.msra.mxu0 0.0
      %759 = vmatpush.msra.mxu0 0.0
      %760 = vmatpush.msra.mxu0 0.0
      %761 = vmatpush.msra.mxu0 0.0
      %762 = vmatpush.msra.mxu0 %v743
      %763 = vmatmul.f32.gmra.mxu0 %v741
      %v764 = vpop.f32.mrf.mxu0
      %v765 = vadd.f32 0.0, %v764
      %766 = vdwg.mxu0
      %767 = vmatpush.msra.mxu0 0.0
      %768 = vmatpush.msra.mxu0 0.0
      %769 = vmatpush.msra.mxu0 0.0
      %770 = vmatpush.msra.mxu0 0.0
      %771 = vmatpush.msra.mxu0 0.0
      %772 = vmatpush.msra.mxu0 0.0
      %773 = vmatpush.msra.mxu0 0.0
      %774 = vmatpush.msra.mxu0 0.0
      %775 = vmatpush.msra.mxu0 0.0
      %776 = vmatpush.msra.mxu0 0.0
      %777 = vmatpush.msra.mxu0 0.0
      %778 = vmatpush.msra.mxu0 0.0
      %779 = vmatpush.msra.mxu0 0.0
      %780 = vmatpush.msra.mxu0 0.0
      %781 = vmatpush.msra.mxu0 0.0
      %782 = vmatpush.msra.mxu0 %v745
      %783 = vmatmul.f32.gmra.mxu0 %v741
      %v784 = vpop.f32.mrf.mxu0
      %v785 = vadd.f32 0.0, %v784
      %786 = vdwg.mxu0
      %v787 = vadd.f32 %v717, %v765
      %v788 = vadd.f32 %v718, %v785
      %v789 = vld [vmem:[#allocation2 + $0x4] sm:$0xff]
      %v790 = vld [vmem:[#allocation2 + $0xc] sm:$0xf]
      %793 = vst [vmem:[#allocation1] ss:$2 sm:$0xff] %v789
      %s794 = scalar_lea.vmem [#allocation1], 16
      %795 = vst [vmem:[%s794] ss:$2 sm:$0xff] %v790
      %v796 = vld.sshfl [vmem:[#allocation1] sm:$0xff pattern:$0x75316420]
      %v797 = vld.sshfl [vmem:[#allocation1 + $0x8] sm:$0xff pattern:$0x75316420]
      %v798 = vld.sshfl [vmem:[#allocation1 + $0x10] sm:$0xff pattern:$0x75316420]
      %799 = vrot.lane.b32.xlu0 %v796, 111
      %v800 = vpop.permute.xlu0 %799
      %801 = vrot.lane.b32.xlu0 %v797, 111
      %v802 = vpop.permute.xlu0 %801
      %803 = vrot.lane.b32.xlu0 %v798, 111
      %v804 = vpop.permute.xlu0 %803
      %vm805 = vcmask 908288
      %v806 = vsel %vm805, %v800, %v802
      %v807 = vsel %vm805, %v802, %v804
      %v810 = vsel %vm214, %v806, 0.0
      %v811 = vsel %vm215, %v807, 0.0
      %s812 = scalar_lea.vmem %s1, 64
      %v813 = vld [vmem:[%s812] sm:$0xff]
      %v815 = vsel %vm261, %v813, 0
      %v818 = vsel %vm265, %v810, 0
      %v821 = vsel %vm265, %v811, 0
      %823 = vmatpush.msra.mxu0 0.0
      %824 = vmatpush.msra.mxu0 0.0
      %825 = vmatpush.msra.mxu0 0.0
      %826 = vmatpush.msra.mxu0 0.0
      %827 = vmatpush.msra.mxu0 0.0
      %828 = vmatpush.msra.mxu0 0.0
      %829 = vmatpush.msra.mxu0 0.0
      %830 = vmatpush.msra.mxu0 0.0
      %831 = vmatpush.msra.mxu0 0.0
      %832 = vmatpush.msra.mxu0 0.0
      %833 = vmatpush.msra.mxu0 0.0
      %834 = vmatpush.msra.mxu0 0.0
      %835 = vmatpush.msra.mxu0 0.0
      %836 = vmatpush.msra.mxu0 0.0
      %837 = vmatpush.msra.mxu0 0.0
      %838 = vmatpush.msra.mxu0 %v818
      %839 = vmatmul.f32.gmra.mxu0 %v815
      %v840 = vpop.f32.mrf.mxu0
      %v841 = vadd.f32 0.0, %v840
      %842 = vdwg.mxu0
      %843 = vmatpush.msra.mxu0 0.0
      %844 = vmatpush.msra.mxu0 0.0
      %845 = vmatpush.msra.mxu0 0.0
      %846 = vmatpush.msra.mxu0 0.0
      %847 = vmatpush.msra.mxu0 0.0
      %848 = vmatpush.msra.mxu0 0.0
      %849 = vmatpush.msra.mxu0 0.0
      %850 = vmatpush.msra.mxu0 0.0
      %851 = vmatpush.msra.mxu0 0.0
      %852 = vmatpush.msra.mxu0 0.0
      %853 = vmatpush.msra.mxu0 0.0
      %854 = vmatpush.msra.mxu0 0.0
      %855 = vmatpush.msra.mxu0 0.0
      %856 = vmatpush.msra.mxu0 0.0
      %857 = vmatpush.msra.mxu0 0.0
      %858 = vmatpush.msra.mxu0 %v821
      %859 = vmatmul.f32.gmra.mxu0 %v815
      %v860 = vpop.f32.mrf.mxu0
      %v861 = vadd.f32 0.0, %v860
      %862 = vdwg.mxu0
      %v863 = vadd.f32 %v787, %v841
      %v864 = vadd.f32 %v788, %v861
      %v865 = vld [vmem:[%s2] sm:$0xff]
      %867 = vset.pattern.permute.xlu0 0
      %868 = vperm.xlu0 %867, %v865
      %v869 = vpop.permute.xlu0 %868
      %v871 = vadd.f32 %v863, %v869
      %v872 = vadd.f32 %v864, %v869
      %v873 = vmax.f32 %v871, 0.0
      %v874 = vmax.f32 %v872, 0.0
      %v877 = vrot.slane %v873, 4
      %v878 = vrot.slane %v874, 4
      %881 = vst [vmem:[%s170] sm:$0xf0] %v877
      %882 = vst [vmem:[%s170 + $0x8] sm:$0xf0] %v878
      %883 = vst [vmem:[%s170 + $0x10] sm:$0xf] %v877
      %884 = vst [vmem:[%s170 + $0x18] sm:$0xf] %v878
      %p885 = scmp.lt.s32.totalorder %s14, 1
      %s886 = scalar_select %p885, %s14, 1
      %s887 = smul.addr %s886, 4
      %s888 = smul.addr %s887, 8
      %s889 = scalar_lea.vmem %s3, %s888
      // Predicated region
      $region33: #{tpu_custom_call.1} parent=31 // pred_check
        %p890 = pneg %p100
      $region34: #{tpu_custom_call.1} parent=31 // pred_check_branch
        %892 = sbr.rel (%p890) target = $region36
      $region35: #{tpu_custom_call.1} parent=31 // pred_region
        _
      $region36: #{tpu_custom_call.1} parent=31 // pred_fallthru
        _
    $region32: #{tpu_custom_call.1} parent=5 // pred_fallthru
      _
    %p893 = scmp.le.s32.totalorder 2, %s9
    // Predicated region
    $region37: #{tpu_custom_call.1} parent=5 // pred_check
      %p894 = pneg %p893
    $region38: #{tpu_custom_call.1} parent=5 // pred_check_branch
      %896 = sbr.rel (%p894) target = $region40
    $region39: #{tpu_custom_call.1} parent=5 // pred_region
      %s897 = ssub.s32 %s9, 2
      // Predicated region
      $region41: #{tpu_custom_call.1} parent=39 // pred_check
        %p898 = pneg %p106
      $region42: #{tpu_custom_call.1} parent=39 // pred_check_branch
        %900 = sbr.rel (%p898) target = $region44
      $region43: #{tpu_custom_call.1} parent=39 // pred_region
        %p901 = scmp.lt.s32.totalorder %s15, 1
        %s902 = scalar_select %p901, %s15, 1
        %s903 = smul.addr %s902, 4
        %s904 = smul.addr %s903, 8
        %s905 = scalar_lea.vmem %s3, %s904
      $region44: #{tpu_custom_call.1} parent=39 // pred_fallthru
        _
    $region40: #{tpu_custom_call.1} parent=5 // pred_fallthru
      _
  $region6: #{tpu_custom_call.1} parent=0 // loop_footer
    %s13 = sadd.s32 1, %s9
  $region7: #{tpu_custom_call.1} parent=0 // loop_footer_branch
    %8 = sbr.rel target = $region3
  $region8: #{tpu_custom_call.1} parent=0 // loop_exit
    _

</llo_original>
